<compile_context>
chip_gen: v7x
topology: tpu7x:2x2x1
jax: 0.10.0
libtpu: 0.0.40
codegen_flags: <defaults>
</compile_context>

<pallas_src>
import jax
import jax.numpy as jnp
from jax.experimental import pallas as pl
from jax.experimental.pallas import tpu as pltpu

# Model dimensions (small, consistent with a graph critic)
N = 8        # nodes per graph
D = 32       # node feature dim
H = 64       # GNN hidden dim
G = 32       # global attribute dim
H2 = 64      # MLP hidden dim
OUT_W = 128  # lane-dense padded output width


def _critic_kernel(state_ref, action_ref,
                   wn_ref, bn_ref, wm_ref, bm_ref, wg_ref, bg_ref,
                   wa_ref, ba_ref, wfin_ref, bfin_ref,
                   q_ref):
    """One grid step = TB graphs.  Both twin critics fused (block-diag weights)."""
    TB = state_ref.shape[0]
    bf16 = jnp.bfloat16

    # conform = state + action  (f32 VPU add), flatten graphs*nodes for the MXU
    x = (state_ref[...] + action_ref[...]).reshape(TB * N, D)

    # ---- fused twin IGNN ----
    # node encoder: (TB*N, D) @ (D, 2H); lanes [0:H] twin1, [H:2H] twin2
    h = jnp.maximum(
        jnp.dot(x.astype(bf16), wn_ref[...],
                preferred_element_type=jnp.float32) + bn_ref[...],
        0.0)                                                           # (TB*N, 2H) f32

    # mean-hoist #1: mean over nodes commutes with the (linear) message layer,
    # so the wm matmul runs over TB rows instead of TB*N rows.
    h3 = h.reshape(TB, N, 2 * H)
    h_mean = jnp.mean(h3, axis=1)                                      # (TB, 2H)
    agg = jnp.dot(h_mean.astype(bf16), wm_ref[...],
                  preferred_element_type=jnp.float32) + bm_ref[...]    # (TB, 2H)

    # node update (residual + ReLU) then mean over nodes (ReLU is nonlinear,
    # so it must happen per-node before the mean).
    node_mean = jnp.mean(jnp.maximum(h3 + agg[:, None, :], 0.0), axis=1)  # (TB, 2H)

    # mean-hoist #2: global readout matmul also runs over TB rows only.
    glob = jnp.dot(node_mean.astype(bf16), wg_ref[...],
                   preferred_element_type=jnp.float32) + bg_ref[...]   # (TB, 2G)

    # ---- fused twin MLPwoLastAct (Linear -> ReLU -> Linear) ----
    hid = jnp.maximum(
        jnp.dot(glob.astype(bf16), wa_ref[...],
                preferred_element_type=jnp.float32) + ba_ref[...],
        0.0)                                                           # (TB, 2H2)

    # final per-twin width-1 Linear as one matmul straight into the lane-dense
    # output slab: wfin column 0 = twin1 wb, column 1 = twin2 wb, rest zero;
    # bfin carries the two final biases in lanes 0/1.
    q_ref[...] = (jnp.dot(hid.astype(bf16), wfin_ref[...],
                          preferred_element_type=jnp.float32) + bfin_ref[...])


def _round_up(x, m):
    return ((x + m - 1) // m) * m


def _vmem_budget_bytes(tb_rows):
    """Per-step VMEM footprint (lane-padded), with headroom."""
    lane = 128
    in_tile = tb_rows * N * lane * 4           # (TB,8,32) f32 tile pads to 128 lanes
    out_tile = tb_rows * OUT_W * 4
    io = 2 * (2 * in_tile + out_tile)          # double-buffered inputs + output
    interm = 3 * tb_rows * N * (2 * H) * 4     # h / node-update temps (f32)
    interm += tb_rows * N * lane * 2           # bf16 operand copies
    weights = 2 << 20                          # fused weights + biases (generous)
    return io + interm + weights + (8 << 20)   # + headroom


def critic_forward(state, action, params, tb=512):
    """state, action: (B, N, D) float32 -> (q1, q2), each (B, 1) float32."""
    B = state.shape[0]
    (wn, bn, wm, bm, wg, bg, wa, ba, wb, bb) = params
    bf16 = jnp.bfloat16

    # ---- fuse twin weights (wrapper-side, tiny one-off XLA ops); bf16 MXU operands ----
    wn_f = jnp.concatenate([wn[0], wn[1]], axis=1).astype(bf16)        # (D, 2H)
    bn_f = jnp.concatenate([bn[0], bn[1]], axis=-1)                    # (1, 2H) f32
    z_hh = jnp.zeros((H, H), jnp.float32)
    wm_f = jnp.block([[wm[0], z_hh], [z_hh, wm[1]]]).astype(bf16)      # (2H, 2H)
    bm_f = jnp.concatenate([bm[0], bm[1]], axis=-1)                    # (1, 2H)
    z_hg = jnp.zeros((H, G), jnp.float32)
    wg_f = jnp.block([[wg[0], z_hg], [z_hg, wg[1]]]).astype(bf16)      # (2H, 2G)
    bg_f = jnp.concatenate([bg[0], bg[1]], axis=-1)                    # (1, 2G)
    z_gh = jnp.zeros((G, H2), jnp.float32)
    wa_f = jnp.block([[wa[0], z_gh], [z_gh, wa[1]]]).astype(bf16)      # (2G, 2H2)
    ba_f = jnp.concatenate([ba[0], ba[1]], axis=-1)                    # (1, 2H2)
    # final layer as a (2H2, OUT_W) matrix producing the lane-dense slab directly
    wfin = (jnp.zeros((2 * H2, OUT_W), jnp.float32)
            .at[:H2, 0].set(wb[0, :, 0])
            .at[H2:, 1].set(wb[1, :, 0])).astype(bf16)                 # (2H2, OUT_W)
    bfin = (jnp.zeros((1, OUT_W), jnp.float32)
            .at[0, 0].set(bb[0, 0, 0])
            .at[0, 1].set(bb[1, 0, 0]))                                # (1, OUT_W) f32

    # ---- adaptive batch tiling: tight padding + >=2 grid steps for v7x megacore ----
    min_steps = 2 if B >= 16 else 1
    steps = max(min_steps, pl.cdiv(B, tb))
    TB = _round_up(pl.cdiv(B, steps), 8)
    steps = max(pl.cdiv(B, TB), min_steps)
    B_pad = steps * TB
    if B_pad != B:
        pad = ((0, B_pad - B), (0, 0), (0, 0))
        state = jnp.pad(state, pad)
        action = jnp.pad(action, pad)

    def w_spec(arr):
        # Grid-invariant weight block (resident across the grid).
        return pl.BlockSpec(arr.shape, lambda b: (0,) * arr.ndim)

    grid_spec = pltpu.PrefetchScalarGridSpec(
        num_scalar_prefetch=0,
        grid=(steps,),
        in_specs=[
            pl.BlockSpec((TB, N, D), lambda b: (b, 0, 0)),   # state tile
            pl.BlockSpec((TB, N, D), lambda b: (b, 0, 0)),   # action tile
            w_spec(wn_f), w_spec(bn_f),
            w_spec(wm_f), w_spec(bm_f),
            w_spec(wg_f), w_spec(bg_f),
            w_spec(wa_f), w_spec(ba_f),
            w_spec(wfin), w_spec(bfin),
        ],
        out_specs=pl.BlockSpec((TB, OUT_W), lambda b: (b, 0)),
    )

    q = pl.pallas_call(
        _critic_kernel,
        out_shape=jax.ShapeDtypeStruct((B_pad, OUT_W), jnp.float32),
        grid_spec=grid_spec,
        compiler_params=pltpu.CompilerParams(
            dimension_semantics=("parallel",),
            vmem_limit_bytes=int(_vmem_budget_bytes(TB))),
    )(state, action, wn_f, bn_f, wm_f, bm_f, wg_f, bg_f, wa_f, ba_f, wfin, bfin)

    return q[:B, 0:1], q[:B, 1:2]


def _xavier_uniform(key, shape):
    fan_in, fan_out = shape[-2], shape[-1]
    limit = (6.0 / (fan_in + fan_out)) ** 0.5
    return jax.random.uniform(key, shape, jnp.float32, -limit, limit)


def init_params(key):
    """Twin-critic parameters, stacked along a leading axis of size 2.
    Linear weights: xavier_uniform; biases: zeros (matches Critic.weight_init)."""
    ks = jax.random.split(key, 5)
    wn = _xavier_uniform(ks[0], (2, D, H));   bn = jnp.zeros((2, 1, H), jnp.float32)
    wm = _xavier_uniform(ks[1], (2, H, H));   bm = jnp.zeros((2, 1, H), jnp.float32)
    wg = _xavier_uniform(ks[2], (2, H, G));   bg = jnp.zeros((2, 1, G), jnp.float32)
    wa = _xavier_uniform(ks[3], (2, G, H2));  ba = jnp.zeros((2, 1, H2), jnp.float32)
    wb = _xavier_uniform(ks[4], (2, H2, 1));  bb = jnp.zeros((2, 1, 1), jnp.float32)
    return (wn, bn, wm, bm, wg, bg, wa, ba, wb, bb)


def _reference_forward(state, action, params):
    """Pure-JAX f32 reference for a correctness check."""
    (wn, bn, wm, bm, wg, bg, wa, ba, wb, bb) = params
    x = state + action                                     # (B, N, D)
    qs = []
    for i in range(2):
        h = jax.nn.relu(x @ wn[i] + bn[i])                 # (B, N, H)
        msg = h @ wm[i] + bm[i]                            # (B, N, H)
        agg = jnp.mean(msg, axis=1, keepdims=True)         # (B, 1, H)
        node = jax.nn.relu(h + agg)                        # (B, N, H)
        glob = jnp.mean(node @ wg[i] + bg[i], axis=1)      # (B, G)
        hid = jax.nn.relu(glob @ wa[i] + ba[i][0])         # (B, H2)
        qs.append(hid @ wb[i] + bb[i][0])                  # (B, 1)
    return qs[0], qs[1]


if __name__ == "__main__":
    key = jax.random.PRNGKey(0)
    k_p = jax.random.fold_in(key, 0)
    params = init_params(k_p)

    # B=2 exercises the single-tile path; B=20 exercises multi-step grid
    # (>=2 steps for megacore) plus batch padding.
    for B in (2, 20):
        k_s, k_a = jax.random.split(jax.random.fold_in(key, B))
        state = jax.random.normal(k_s, (B, N, D), jnp.float32)
        action = jax.random.normal(k_a, (B, N, D), jnp.float32)

        q1, q2 = critic_forward(state, action, params)
        jax.block_until_ready((q1, q2))

        r1, r2 = _reference_forward(state, action, params)
        assert q1.shape == (B, 1) and q2.shape == (B, 1)
        # tolerance loosened vs the pure-f32 version: MXU operands are bf16
        # (f32 accumulation), which perturbs results at the ~1e-2 relative level.
        assert jnp.allclose(q1, r1, atol=5e-2, rtol=5e-2), (
            B, float(jnp.max(jnp.abs(q1 - r1))))
        assert jnp.allclose(q2, r2, atol=5e-2, rtol=5e-2), (
            B, float(jnp.max(jnp.abs(q2 - r2))))

    print("KERNEL_OK")
</pallas_src>

<mosaic_0001>
module attributes {stable_mosaic.version = 11 : i64} {
  func.func @_critic_kernel(%arg0: i32, %arg1: memref<8x8x32xf32, #tpu.memory_space<vmem>>, %arg2: memref<8x8x32xf32, #tpu.memory_space<vmem>>, %arg3: memref<32x128xbf16, #tpu.memory_space<vmem>>, %arg4: memref<1x128xf32, #tpu.memory_space<vmem>>, %arg5: memref<128x128xbf16, #tpu.memory_space<vmem>>, %arg6: memref<1x128xf32, #tpu.memory_space<vmem>>, %arg7: memref<128x64xbf16, #tpu.memory_space<vmem>>, %arg8: memref<1x64xf32, #tpu.memory_space<vmem>>, %arg9: memref<64x128xbf16, #tpu.memory_space<vmem>>, %arg10: memref<1x128xf32, #tpu.memory_space<vmem>>, %arg11: memref<128x128xbf16, #tpu.memory_space<vmem>>, %arg12: memref<1x128xf32, #tpu.memory_space<vmem>>, %arg13: memref<8x128xf32, #tpu.memory_space<vmem>>) attributes {dimension_semantics = [#tpu.dimension_semantics<parallel>], iteration_bounds = array<i64: 1>, scalar_prefetch = 0 : i64, scratch_operands = 0 : i64, tpu.core_type = #tpu.core_type<tc>, window_params = [{transform_indices = @transform_0, window_bounds = array<i64: 8, 8, 32>}, {transform_indices = @transform_1, window_bounds = array<i64: 8, 8, 32>}, {pipeline_mode = #tpu.pipeline_mode<synchronous>, transform_indices = @transform_2, window_bounds = array<i64: 32, 128>}, {pipeline_mode = #tpu.pipeline_mode<synchronous>, transform_indices = @transform_3, window_bounds = array<i64: 1, 128>}, {pipeline_mode = #tpu.pipeline_mode<synchronous>, transform_indices = @transform_4, window_bounds = array<i64: 128, 128>}, {pipeline_mode = #tpu.pipeline_mode<synchronous>, transform_indices = @transform_5, window_bounds = array<i64: 1, 128>}, {pipeline_mode = #tpu.pipeline_mode<synchronous>, transform_indices = @transform_6, window_bounds = array<i64: 128, 64>}, {pipeline_mode = #tpu.pipeline_mode<synchronous>, transform_indices = @transform_7, window_bounds = array<i64: 1, 64>}, {pipeline_mode = #tpu.pipeline_mode<synchronous>, transform_indices = @transform_8, window_bounds = array<i64: 64, 128>}, {pipeline_mode = #tpu.pipeline_mode<synchronous>, transform_indices = @transform_9, window_bounds = array<i64: 1, 128>}, {pipeline_mode = #tpu.pipeline_mode<synchronous>, transform_indices = @transform_10, window_bounds = array<i64: 128, 128>}, {pipeline_mode = #tpu.pipeline_mode<synchronous>, transform_indices = @transform_11, window_bounds = array<i64: 1, 128>}, {transform_indices = @transform_12, window_bounds = array<i64: 8, 128>}]} {
    %c0 = arith.constant 0 : index
    %c0_0 = arith.constant 0 : index
    %c0_1 = arith.constant 0 : index
    %0 = vector.load %arg1[%c0, %c0_0, %c0_1] : memref<8x8x32xf32, #tpu.memory_space<vmem>>, vector<8x8x32xf32>
    %c0_2 = arith.constant 0 : index
    %c0_3 = arith.constant 0 : index
    %c0_4 = arith.constant 0 : index
    %1 = vector.load %arg2[%c0_2, %c0_3, %c0_4] : memref<8x8x32xf32, #tpu.memory_space<vmem>>, vector<8x8x32xf32>
    %2 = arith.addf %0, %1 : vector<8x8x32xf32>
    %3 = vector.shape_cast %2 : vector<8x8x32xf32> to vector<64x32xf32>
    %4 = arith.truncf %3 : vector<64x32xf32> to vector<64x32xbf16>
    %c0_5 = arith.constant 0 : index
    %c0_6 = arith.constant 0 : index
    %5 = vector.load %arg3[%c0_5, %c0_6] : memref<32x128xbf16, #tpu.memory_space<vmem>>, vector<32x128xbf16>
    %cst = arith.constant dense<0.000000e+00> : vector<64x128xf32>
    %6 = tpu.matmul %4, %5, %cst {dimension_numbers = #tpu.dot_dimension_numbers<[1], [0], [0], [1], [0, 0, 1, 1], [], []>} : vector<64x32xbf16>, vector<32x128xbf16>, vector<64x128xf32> -> vector<64x128xf32>
    %c0_7 = arith.constant 0 : index
    %c0_8 = arith.constant 0 : index
    %7 = vector.load %arg4[%c0_7, %c0_8] : memref<1x128xf32, #tpu.memory_space<vmem>>, vector<1x128xf32>
    %8 = vector.broadcast %7 : vector<1x128xf32> to vector<64x128xf32>
    %9 = arith.addf %6, %8 : vector<64x128xf32>
    %cst_9 = arith.constant 0.000000e+00 : f32
    %10 = vector.broadcast %cst_9 : f32 to vector<64x128xf32>
    %11 = arith.maximumf %9, %10 : vector<64x128xf32>
    %12 = vector.shape_cast %11 : vector<64x128xf32> to vector<8x8x128xf32>
    %cst_10 = arith.constant dense<0.000000e+00> : vector<8x128xf32>
    %13 = vector.multi_reduction <add>, %12, %cst_10 [1] : vector<8x8x128xf32> to vector<8x128xf32>
    %cst_11 = arith.constant 8.000000e+00 : f32
    %14 = vector.broadcast %cst_11 : f32 to vector<8x128xf32>
    %15 = arith.divf %13, %14 : vector<8x128xf32>
    %16 = arith.truncf %15 : vector<8x128xf32> to vector<8x128xbf16>
    %c0_12 = arith.constant 0 : index
    %c0_13 = arith.constant 0 : index
    %17 = vector.load %arg5[%c0_12, %c0_13] : memref<128x128xbf16, #tpu.memory_space<vmem>>, vector<128x128xbf16>
    %cst_14 = arith.constant dense<0.000000e+00> : vector<8x128xf32>
    %18 = tpu.matmul %16, %17, %cst_14 {dimension_numbers = #tpu.dot_dimension_numbers<[1], [0], [0], [1], [0, 0, 1, 1], [], []>} : vector<8x128xbf16>, vector<128x128xbf16>, vector<8x128xf32> -> vector<8x128xf32>
    %c0_15 = arith.constant 0 : index
    %c0_16 = arith.constant 0 : index
    %19 = vector.load %arg6[%c0_15, %c0_16] : memref<1x128xf32, #tpu.memory_space<vmem>>, vector<1x128xf32>
    %20 = vector.broadcast %19 : vector<1x128xf32> to vector<8x128xf32>
    %21 = arith.addf %18, %20 : vector<8x128xf32>
    %22 = vector.shape_cast %21 : vector<8x128xf32> to vector<8x1x128xf32>
    %23 = vector.broadcast %22 : vector<8x1x128xf32> to vector<8x8x128xf32>
    %24 = arith.addf %12, %23 : vector<8x8x128xf32>
    %cst_17 = arith.constant 0.000000e+00 : f32
    %25 = vector.broadcast %cst_17 : f32 to vector<8x8x128xf32>
    %26 = arith.maximumf %24, %25 : vector<8x8x128xf32>
    %cst_18 = arith.constant dense<0.000000e+00> : vector<8x128xf32>
    %27 = vector.multi_reduction <add>, %26, %cst_18 [1] : vector<8x8x128xf32> to vector<8x128xf32>
    %cst_19 = arith.constant 8.000000e+00 : f32
    %28 = vector.broadcast %cst_19 : f32 to vector<8x128xf32>
    %29 = arith.divf %27, %28 : vector<8x128xf32>
    %30 = arith.truncf %29 : vector<8x128xf32> to vector<8x128xbf16>
    %c0_20 = arith.constant 0 : index
    %c0_21 = arith.constant 0 : index
    %31 = vector.load %arg7[%c0_20, %c0_21] : memref<128x64xbf16, #tpu.memory_space<vmem>>, vector<128x64xbf16>
    %cst_22 = arith.constant dense<0.000000e+00> : vector<8x64xf32>
    %32 = tpu.matmul %30, %31, %cst_22 {dimension_numbers = #tpu.dot_dimension_numbers<[1], [0], [0], [1], [0, 0, 1, 1], [], []>} : vector<8x128xbf16>, vector<128x64xbf16>, vector<8x64xf32> -> vector<8x64xf32>
    %c0_23 = arith.constant 0 : index
    %c0_24 = arith.constant 0 : index
    %33 = vector.load %arg8[%c0_23, %c0_24] : memref<1x64xf32, #tpu.memory_space<vmem>>, vector<1x64xf32>
    %34 = vector.broadcast %33 : vector<1x64xf32> to vector<8x64xf32>
    %35 = arith.addf %32, %34 : vector<8x64xf32>
    %36 = arith.truncf %35 : vector<8x64xf32> to vector<8x64xbf16>
    %c0_25 = arith.constant 0 : index
    %c0_26 = arith.constant 0 : index
    %37 = vector.load %arg9[%c0_25, %c0_26] : memref<64x128xbf16, #tpu.memory_space<vmem>>, vector<64x128xbf16>
    %cst_27 = arith.constant dense<0.000000e+00> : vector<8x128xf32>
    %38 = tpu.matmul %36, %37, %cst_27 {dimension_numbers = #tpu.dot_dimension_numbers<[1], [0], [0], [1], [0, 0, 1, 1], [], []>} : vector<8x64xbf16>, vector<64x128xbf16>, vector<8x128xf32> -> vector<8x128xf32>
    %c0_28 = arith.constant 0 : index
    %c0_29 = arith.constant 0 : index
    %39 = vector.load %arg10[%c0_28, %c0_29] : memref<1x128xf32, #tpu.memory_space<vmem>>, vector<1x128xf32>
    %40 = vector.broadcast %39 : vector<1x128xf32> to vector<8x128xf32>
    %41 = arith.addf %38, %40 : vector<8x128xf32>
    %cst_30 = arith.constant 0.000000e+00 : f32
    %42 = vector.broadcast %cst_30 : f32 to vector<8x128xf32>
    %43 = arith.maximumf %41, %42 : vector<8x128xf32>
    %44 = arith.truncf %43 : vector<8x128xf32> to vector<8x128xbf16>
    %c0_31 = arith.constant 0 : index
    %c0_32 = arith.constant 0 : index
    %45 = vector.load %arg11[%c0_31, %c0_32] : memref<128x128xbf16, #tpu.memory_space<vmem>>, vector<128x128xbf16>
    %cst_33 = arith.constant dense<0.000000e+00> : vector<8x128xf32>
    %46 = tpu.matmul %44, %45, %cst_33 {dimension_numbers = #tpu.dot_dimension_numbers<[1], [0], [0], [1], [0, 0, 1, 1], [], []>} : vector<8x128xbf16>, vector<128x128xbf16>, vector<8x128xf32> -> vector<8x128xf32>
    %c0_34 = arith.constant 0 : index
    %c0_35 = arith.constant 0 : index
    %47 = vector.load %arg12[%c0_34, %c0_35] : memref<1x128xf32, #tpu.memory_space<vmem>>, vector<1x128xf32>
    %48 = vector.broadcast %47 : vector<1x128xf32> to vector<8x128xf32>
    %49 = arith.addf %46, %48 : vector<8x128xf32>
    %c0_36 = arith.constant 0 : index
    %c0_37 = arith.constant 0 : index
    %50 = vector.load %arg13[%c0_36, %c0_37] : memref<8x128xf32, #tpu.memory_space<vmem>>, vector<8x128xf32>
    tpu.vector_store %arg13[%c0_36, %c0_37], %49 {strides = array<i32>} : memref<8x128xf32, #tpu.memory_space<vmem>>, vector<8x128xf32>,
    return
  }
  func.func @transform_0(%arg0: i32) -> (i32, i32, i32) {
    %c0_i32 = arith.constant 0 : i32
    %c0_i32_0 = arith.constant 0 : i32
    %c0_i32_1 = arith.constant 0 : i32
    return %arg0, %c0_i32, %c0_i32_0 : i32, i32, i32
  }
  func.func @transform_1(%arg0: i32) -> (i32, i32, i32) {
    %c0_i32 = arith.constant 0 : i32
    %c0_i32_0 = arith.constant 0 : i32
    %c0_i32_1 = arith.constant 0 : i32
    return %arg0, %c0_i32, %c0_i32_0 : i32, i32, i32
  }
  func.func @transform_2(%arg0: i32) -> (i32, i32) {
    %c0_i32 = arith.constant 0 : i32
    %c0_i32_0 = arith.constant 0 : i32
    %c0_i32_1 = arith.constant 0 : i32
    return %c0_i32, %c0_i32_0 : i32, i32
  }
  func.func @transform_3(%arg0: i32) -> (i32, i32) {
    %c0_i32 = arith.constant 0 : i32
    %c0_i32_0 = arith.constant 0 : i32
    %c0_i32_1 = arith.constant 0 : i32
    return %c0_i32, %c0_i32_0 : i32, i32
  }
  func.func @transform_4(%arg0: i32) -> (i32, i32) {
    %c0_i32 = arith.constant 0 : i32
    %c0_i32_0 = arith.constant 0 : i32
    %c0_i32_1 = arith.constant 0 : i32
    return %c0_i32, %c0_i32_0 : i32, i32
  }
  func.func @transform_5(%arg0: i32) -> (i32, i32) {
    %c0_i32 = arith.constant 0 : i32
    %c0_i32_0 = arith.constant 0 : i32
    %c0_i32_1 = arith.constant 0 : i32
    return %c0_i32, %c0_i32_0 : i32, i32
  }
  func.func @transform_6(%arg0: i32) -> (i32, i32) {
    %c0_i32 = arith.constant 0 : i32
    %c0_i32_0 = arith.constant 0 : i32
    %c0_i32_1 = arith.constant 0 : i32
    return %c0_i32, %c0_i32_0 : i32, i32
  }
  func.func @transform_7(%arg0: i32) -> (i32, i32) {
    %c0_i32 = arith.constant 0 : i32
    %c0_i32_0 = arith.constant 0 : i32
    %c0_i32_1 = arith.constant 0 : i32
    return %c0_i32, %c0_i32_0 : i32, i32
  }
  func.func @transform_8(%arg0: i32) -> (i32, i32) {
    %c0_i32 = arith.constant 0 : i32
    %c0_i32_0 = arith.constant 0 : i32
    %c0_i32_1 = arith.constant 0 : i32
    return %c0_i32, %c0_i32_0 : i32, i32
  }
  func.func @transform_9(%arg0: i32) -> (i32, i32) {
    %c0_i32 = arith.constant 0 : i32
    %c0_i32_0 = arith.constant 0 : i32
    %c0_i32_1 = arith.constant 0 : i32
    return %c0_i32, %c0_i32_0 : i32, i32
  }
  func.func @transform_10(%arg0: i32) -> (i32, i32) {
    %c0_i32 = arith.constant 0 : i32
    %c0_i32_0 = arith.constant 0 : i32
    %c0_i32_1 = arith.constant 0 : i32
    return %c0_i32, %c0_i32_0 : i32, i32
  }
  func.func @transform_11(%arg0: i32) -> (i32, i32) {
    %c0_i32 = arith.constant 0 : i32
    %c0_i32_0 = arith.constant 0 : i32
    %c0_i32_1 = arith.constant 0 : i32
    return %c0_i32, %c0_i32_0 : i32, i32
  }
  func.func @transform_12(%arg0: i32) -> (i32, i32) {
    %c0_i32 = arith.constant 0 : i32
    %c0_i32_0 = arith.constant 0 : i32
    return %arg0, %c0_i32 : i32, i32
  }
}

</mosaic_0001>

<llo_original>
// kernel: tpu_custom_call.1
$region0: #{tpu_custom_call.1}
  #allocation0 [shape = 'u32[]', space=smem, size = 0x4, offset = 0x4, fixed_abs, tag = 'smem constant byte address 0x4 - core index']
  #allocation1 [shape = 'u32[144,128]{1,0:T(1,128)}', space=vmem, size = 0x12000, scoped, tag = 'internal scratch']
  %s0 = inlined_call_operand.vmem [shape: f32[8,8,32], index: 0, kind: input, shape index: {}]
  %s1 = inlined_call_operand.hbm [shape: f32[8,8,32], index: 1, kind: input, shape index: {}]
  %s2 = inlined_call_operand.hbm [shape: bf16[32,128], index: 2, kind: input, shape index: {}]
  %s3 = inlined_call_operand.vmem [shape: f32[1,128], index: 3, kind: input, shape index: {}]
  %s4 = inlined_call_operand.hbm [shape: bf16[128,128], index: 4, kind: input, shape index: {}]
  %s5 = inlined_call_operand.vmem [shape: f32[1,128], index: 5, kind: input, shape index: {}]
  %s6 = inlined_call_operand.vmem [shape: bf16[128,64], index: 6, kind: input, shape index: {}]
  %s7 = inlined_call_operand.hbm [shape: f32[1,64], index: 7, kind: input, shape index: {}]
  %s8 = inlined_call_operand.hbm [shape: bf16[64,128], index: 8, kind: input, shape index: {}]
  %s9 = inlined_call_operand.hbm [shape: f32[1,128], index: 9, kind: input, shape index: {}]
  %s10 = inlined_call_operand.vmem [shape: bf16[128,128], index: 10, kind: input, shape index: {}]
  %s11 = inlined_call_operand.vmem [shape: f32[1,128], index: 11, kind: input, shape index: {}]
  %s12 = inlined_call_operand.hbm [shape: f32[8,128], index: 12, kind: output, shape index: {}]
  %s13 = sld [smem:[#allocation0]]
  $region82: #{tpu_custom_call.1} parent=0
    _
  %s15 = ssub.s32 1, %s13
  %s16 = scalar_select 0, %s15, %s13
  $region1: #{tpu_custom_call.1} parent=0
    #allocation2 [shape = 'u8[32768]{0}', space=vmem, size = 0x8000, scoped, tag = 'input window, operand 1, single buffered']
    #allocation3 [shape = 's32[1]{0}', space=sflag, size = 0x4, scoped, tag = 'scoped memory for tpu_custom_call.1']
    #allocation4 [shape = 's32[1]{0}', space=sflag, size = 0x4, scoped, tag = 'scoped memory for tpu_custom_call.1']
    #allocation5 [shape = 'u8[8192]{0}', space=vmem, size = 0x2000, scoped, tag = 'input window, operand 2, single buffered']
    #allocation6 [shape = 's32[1]{0}', space=sflag, size = 0x4, scoped, tag = 'scoped memory for tpu_custom_call.1']
    #allocation7 [shape = 'u8[32768]{0}', space=vmem, size = 0x8000, scoped, tag = 'input window, operand 4, single buffered']
    #allocation8 [shape = 'u8[512]{0}', space=vmem, size = 0x400, scoped, tag = 'input window, operand 7, single buffered']
    #allocation9 [shape = 's32[1]{0}', space=sflag, size = 0x4, scoped, tag = 'scoped memory for tpu_custom_call.1']
    #allocation10 [shape = 'u8[16384]{0}', space=vmem, size = 0x4000, scoped, tag = 'input window, operand 8, single buffered']
    #allocation11 [shape = 'u8[512]{0}', space=vmem, size = 0x400, scoped, tag = 'input window, operand 9, single buffered']
    #allocation12 [shape = 's32[1]{0}', space=sflag, size = 0x4, scoped, tag = 'scoped memory for tpu_custom_call.1']
    #allocation13 [shape = 'u8[4096]{0}', space=vmem, size = 0x1000, scoped, tag = 'output window, operand 0, single buffered']
    %17 = vsyncpa [#allocation3], 0
    %18 = vsyncpa [#allocation6], 0
    %19 = vsyncpa [#allocation9], 0
    %20 = vsyncpa [#allocation12], 0
    %21 = vsyncpa [#allocation4], 0
    // Predicated region
    $region2: #{tpu_custom_call.1} parent=1 // pred_check
      _
    $region3: #{tpu_custom_call.1} parent=1 // pred_check_branch
      %23 = sbr.rel (0) target = $region5
    $region4: #{tpu_custom_call.1} parent=1 // pred_region
      _
    $region5: #{tpu_custom_call.1} parent=1 // pred_fallthru
      _
    // Predicated region
    $region6: #{tpu_custom_call.1} parent=1 // pred_check
      _
    $region7: #{tpu_custom_call.1} parent=1 // pred_check_branch
      %25 = sbr.rel (0) target = $region9
    $region8: #{tpu_custom_call.1} parent=1 // pred_region
      %s27 = ssub.s32 1024, 1024
      %28 = vsyncadd [#allocation3], %s27
      %s29 = sshll.u32 [#allocation2], 4
      %s30 = int_to_ptr.vmem [resolvable:$true] %s29
      %35 = dma.hbm_to_vmem [thread:$0]  %s1, 1024, %s30, [#allocation3], 128, 128, 8
    $region9: #{tpu_custom_call.1} parent=1 // pred_fallthru
      _
    // Predicated region
    $region10: #{tpu_custom_call.1} parent=1 // pred_check
      _
    $region11: #{tpu_custom_call.1} parent=1 // pred_check_branch
      %37 = sbr.rel (0) target = $region13
    $region12: #{tpu_custom_call.1} parent=1 // pred_region
      %s39 = ssub.s32 256, 256
      %40 = vsyncadd [#allocation6], %s39
      %s41 = sshll.u32 [#allocation5], 4
      %s42 = int_to_ptr.vmem [resolvable:$true] %s41
      %47 = dma.hbm_to_vmem [thread:$0]  %s2, 256, %s42, [#allocation6], 64, 64, 4
    $region13: #{tpu_custom_call.1} parent=1 // pred_fallthru
      _
    // Predicated region
    $region14: #{tpu_custom_call.1} parent=1 // pred_check
      _
    $region15: #{tpu_custom_call.1} parent=1 // pred_check_branch
      %49 = sbr.rel (0) target = $region17
    $region16: #{tpu_custom_call.1} parent=1 // pred_region
      _
    $region17: #{tpu_custom_call.1} parent=1 // pred_fallthru
      _
    // Predicated region
    $region18: #{tpu_custom_call.1} parent=1 // pred_check
      _
    $region19: #{tpu_custom_call.1} parent=1 // pred_check_branch
      %51 = sbr.rel (0) target = $region21
    $region20: #{tpu_custom_call.1} parent=1 // pred_region
      %s53 = ssub.s32 1024, 1024
      %54 = vsyncadd [#allocation6], %s53
      %s55 = sshll.u32 [#allocation7], 4
      %s56 = int_to_ptr.vmem [resolvable:$true] %s55
      %61 = dma.hbm_to_vmem [thread:$0]  %s4, 1024, %s56, [#allocation6], 64, 64, 4
    $region21: #{tpu_custom_call.1} parent=1 // pred_fallthru
      _
    // Predicated region
    $region22: #{tpu_custom_call.1} parent=1 // pred_check
      _
    $region23: #{tpu_custom_call.1} parent=1 // pred_check_branch
      %63 = sbr.rel (0) target = $region25
    $region24: #{tpu_custom_call.1} parent=1 // pred_region
      _
    $region25: #{tpu_custom_call.1} parent=1 // pred_fallthru
      _
    // Predicated region
    $region26: #{tpu_custom_call.1} parent=1 // pred_check
      _
    $region27: #{tpu_custom_call.1} parent=1 // pred_check_branch
      %65 = sbr.rel (0) target = $region29
    $region28: #{tpu_custom_call.1} parent=1 // pred_region
      _
    $region29: #{tpu_custom_call.1} parent=1 // pred_fallthru
      _
    // Predicated region
    $region30: #{tpu_custom_call.1} parent=1 // pred_check
      _
    $region31: #{tpu_custom_call.1} parent=1 // pred_check_branch
      %67 = sbr.rel (0) target = $region33
    $region32: #{tpu_custom_call.1} parent=1 // pred_region
      %s69 = ssub.s32 16, 16
      %70 = vsyncadd [#allocation9], %s69
      %s72 = sshll.u32 [#allocation8], 4
      %s73 = int_to_ptr.vmem [resolvable:$true] %s72
      %75 = dma.hbm_to_vmem [thread:$0]  %s7, 16, %s73, [#allocation9]
    $region33: #{tpu_custom_call.1} parent=1 // pred_fallthru
      _
    // Predicated region
    $region34: #{tpu_custom_call.1} parent=1 // pred_check
      _
    $region35: #{tpu_custom_call.1} parent=1 // pred_check_branch
      %77 = sbr.rel (0) target = $region37
    $region36: #{tpu_custom_call.1} parent=1 // pred_region
      %s79 = ssub.s32 512, 512
      %80 = vsyncadd [#allocation9], %s79
      %s81 = sshll.u32 [#allocation10], 4
      %s82 = int_to_ptr.vmem [resolvable:$true] %s81
      %87 = dma.hbm_to_vmem [thread:$0]  %s8, 512, %s82, [#allocation9], 64, 64, 4
    $region37: #{tpu_custom_call.1} parent=1 // pred_fallthru
      _
    // Predicated region
    $region38: #{tpu_custom_call.1} parent=1 // pred_check
      _
    $region39: #{tpu_custom_call.1} parent=1 // pred_check_branch
      %89 = sbr.rel (0) target = $region41
    $region40: #{tpu_custom_call.1} parent=1 // pred_region
      %s91 = ssub.s32 16, 16
      %92 = vsyncadd [#allocation12], %s91
      %s94 = sshll.u32 [#allocation11], 4
      %s95 = int_to_ptr.vmem [resolvable:$true] %s94
      %97 = dma.hbm_to_vmem [thread:$0]  %s9, 16, %s95, [#allocation12]
    $region41: #{tpu_custom_call.1} parent=1 // pred_fallthru
      _
    // Predicated region
    $region42: #{tpu_custom_call.1} parent=1 // pred_check
      _
    $region43: #{tpu_custom_call.1} parent=1 // pred_check_branch
      %99 = sbr.rel (0) target = $region45
    $region44: #{tpu_custom_call.1} parent=1 // pred_region
      _
    $region45: #{tpu_custom_call.1} parent=1 // pred_fallthru
      _
    // Predicated region
    $region46: #{tpu_custom_call.1} parent=1 // pred_check
      _
    $region47: #{tpu_custom_call.1} parent=1 // pred_check_branch
      %101 = sbr.rel (0) target = $region49
    $region48: #{tpu_custom_call.1} parent=1 // pred_region
      _
    $region49: #{tpu_custom_call.1} parent=1 // pred_fallthru
      _
    // Predicated region
    $region50: #{tpu_custom_call.1} parent=1 // pred_check
      _
    $region51: #{tpu_custom_call.1} parent=1 // pred_check_branch
      %103 = sbr.rel (0) target = $region53
    $region52: #{tpu_custom_call.1} parent=1 // pred_region
      %104 = dma.done [#allocation3], 1024
    $region53: #{tpu_custom_call.1} parent=1 // pred_fallthru
      _
    // Predicated region
    $region54: #{tpu_custom_call.1} parent=1 // pred_check
      _
    $region55: #{tpu_custom_call.1} parent=1 // pred_check_branch
      %106 = sbr.rel (0) target = $region57
    $region56: #{tpu_custom_call.1} parent=1 // pred_region
      %107 = dma.done [#allocation6], 256
    $region57: #{tpu_custom_call.1} parent=1 // pred_fallthru
      _
    // Predicated region
    $region58: #{tpu_custom_call.1} parent=1 // pred_check
      _
    $region59: #{tpu_custom_call.1} parent=1 // pred_check_branch
      %109 = sbr.rel (0) target = $region61
    $region60: #{tpu_custom_call.1} parent=1 // pred_region
      %110 = dma.done [#allocation6], 1024
    $region61: #{tpu_custom_call.1} parent=1 // pred_fallthru
      _
    // Predicated region
    $region62: #{tpu_custom_call.1} parent=1 // pred_check
      _
    $region63: #{tpu_custom_call.1} parent=1 // pred_check_branch
      %112 = sbr.rel (0) target = $region65
    $region64: #{tpu_custom_call.1} parent=1 // pred_region
      %113 = dma.done [#allocation9], 16
    $region65: #{tpu_custom_call.1} parent=1 // pred_fallthru
      _
    // Predicated region
    $region66: #{tpu_custom_call.1} parent=1 // pred_check
      _
    $region67: #{tpu_custom_call.1} parent=1 // pred_check_branch
      %115 = sbr.rel (0) target = $region69
    $region68: #{tpu_custom_call.1} parent=1 // pred_region
      %116 = dma.done [#allocation9], 512
    $region69: #{tpu_custom_call.1} parent=1 // pred_fallthru
      _
    // Predicated region
    $region70: #{tpu_custom_call.1} parent=1 // pred_check
      _
    $region71: #{tpu_custom_call.1} parent=1 // pred_check_branch
      %118 = sbr.rel (0) target = $region73
    $region72: #{tpu_custom_call.1} parent=1 // pred_region
      %119 = dma.done [#allocation12], 16
    $region73: #{tpu_custom_call.1} parent=1 // pred_fallthru
      _
    %v121 = vld [vmem:[%s0] sm:$0xff]
    %v122 = vld [vmem:[%s0 + $0x8] sm:$0xff]
    %v123 = vld [vmem:[%s0 + $0x10] sm:$0xff]
    %v124 = vld [vmem:[%s0 + $0x18] sm:$0xff]
    %v125 = vld [vmem:[%s0 + $0x20] sm:$0xff]
    %v126 = vld [vmem:[%s0 + $0x28] sm:$0xff]
    %v127 = vld [vmem:[%s0 + $0x30] sm:$0xff]
    %v128 = vld [vmem:[%s0 + $0x38] sm:$0xff]
    %v129 = vld [vmem:[#allocation2] sm:$0xff]
    %v130 = vld [vmem:[#allocation2 + $0x8] sm:$0xff]
    %v131 = vld [vmem:[#allocation2 + $0x10] sm:$0xff]
    %v132 = vld [vmem:[#allocation2 + $0x18] sm:$0xff]
    %v133 = vld [vmem:[#allocation2 + $0x20] sm:$0xff]
    %v134 = vld [vmem:[#allocation2 + $0x28] sm:$0xff]
    %v135 = vld [vmem:[#allocation2 + $0x30] sm:$0xff]
    %v136 = vld [vmem:[#allocation2 + $0x38] sm:$0xff]
    %v137 = vadd.f32 %v121, %v129
    %v138 = vadd.f32 %v122, %v130
    %v139 = vadd.f32 %v123, %v131
    %v140 = vadd.f32 %v124, %v132
    %v141 = vadd.f32 %v125, %v133
    %v142 = vadd.f32 %v126, %v134
    %v143 = vadd.f32 %v127, %v135
    %v144 = vadd.f32 %v128, %v136
    %v145 = vpack.c.bf16 %v138, %v137
    %v146 = vpack.c.bf16 %v140, %v139
    %v147 = vpack.c.bf16 %v142, %v141
    %v148 = vpack.c.bf16 %v144, %v143
    %v149 = vld [vmem:[#allocation5] sm:$0xf]
    %v150 = vld [vmem:[#allocation5 + $0x4] sm:$0xf]
    %v151 = vld [vmem:[#allocation5 + $0x8] sm:$0xf]
    %v152 = vld [vmem:[#allocation5 + $0xc] sm:$0xf]
    %v153 = vld [vmem:[%s3] sm:$0x1]
    %v155 = vlaneseq
    %v156 = vshrl.u32 %v155, 7
    %v157 = vsub.s32 0, %v156
    %v158 = vrot.slane %v153, %v157
    %v164 = vunpack.c.l.b16 %v149
    %v165 = vunpack.c.l.b16 %v150
    %v166 = vunpack.c.l.b16 %v151
    %v167 = vunpack.c.l.b16 %v152
    %v168 = vpack.c.b16 %v165, %v164
    %v169 = vpack.c.b16 %v167, %v166
    %vm172 = vcmask 261120
    %v174 = vsel %vm172, %v145, 0
    %v177 = vsel %vm172, %v146, 0
    %v180 = vsel %vm172, %v147, 0
    %v183 = vsel %vm172, %v148, 0
    %185 = vmatprep.subr.bf16.mxu0 0
    %186 = vmatpush1.bf16.msra.mxu0 %v168
    %187 = vmatprep.subr.bf16.mxu0 0
    %188 = vmatpush1.bf16.msra.mxu0 %v169
    %189 = vmatprep.subr.bf16.mxu0 0
    %190 = vmatpush1.bf16.msra.mxu0 0
    %191 = vmatprep.subr.bf16.mxu0 0
    %192 = vmatpush1.bf16.msra.mxu0 0
    %193 = vmatprep.subr.bf16.mxu0 0
    %194 = vmatpush1.bf16.msra.mxu0 0
    %195 = vmatprep.subr.bf16.mxu0 0
    %196 = vmatpush1.bf16.msra.mxu0 0
    %197 = vmatprep.subr.bf16.mxu0 0
    %198 = vmatpush1.bf16.msra.mxu0 0
    %199 = vmatprep.subr.bf16.mxu0 0
    %200 = vmatpush1.bf16.msra.mxu0 0
    %201 = vmatprep.subr.bf16.mxu0 0
    %202 = vmatpush1.bf16.msra.mxu0 0
    %203 = vmatprep.subr.bf16.mxu0 0
    %204 = vmatpush1.bf16.msra.mxu0 0
    %205 = vmatprep.subr.bf16.mxu0 0
    %206 = vmatpush1.bf16.msra.mxu0 0
    %207 = vmatprep.subr.bf16.mxu0 0
    %208 = vmatpush1.bf16.msra.mxu0 0
    %209 = vmatprep.subr.bf16.mxu0 0
    %210 = vmatpush1.bf16.msra.mxu0 0
    %211 = vmatprep.subr.bf16.mxu0 0
    %212 = vmatpush1.bf16.msra.mxu0 0
    %213 = vmatprep.subr.bf16.mxu0 0
    %214 = vmatpush1.bf16.msra.mxu0 0
    %215 = vmatprep.subr.bf16.mxu0 0
    %216 = vmatpush1.bf16.msra.mxu0 0
    %217 = vmatprep.mubr.bf16.mxu0 0
    %218 = vmatmul.mubr.bf16.gmra.mrb[0].mxu0 %v174
    %v219 = vpop.f32.mrb[0].mxu0
    %v220 = vadd.f32 %v158, %v219
    %v221 = vpop.f32.mrb[0].mxu0
    %v222 = vpop.f32.mrb[0].mxu0
    %v223 = vadd.f32 %v158, %v222
    %v224 = vpop.f32.mrb[0].mxu0
    %225 = vmatprep.mubr.bf16.mxu0 0
    %226 = vmatmul.mubr.bf16.gmra.mrb[0].mxu0 %v177
    %v227 = vpop.f32.mrb[0].mxu0
    %v228 = vadd.f32 %v158, %v227
    %v229 = vpop.f32.mrb[0].mxu0
    %v230 = vpop.f32.mrb[0].mxu0
    %v231 = vadd.f32 %v158, %v230
    %v232 = vpop.f32.mrb[0].mxu0
    %233 = vmatprep.mubr.bf16.mxu0 0
    %234 = vmatmul.mubr.bf16.gmra.mrb[0].mxu0 %v180
    %v235 = vpop.f32.mrb[0].mxu0
    %v236 = vadd.f32 %v158, %v235
    %v237 = vpop.f32.mrb[0].mxu0
    %v238 = vpop.f32.mrb[0].mxu0
    %v239 = vadd.f32 %v158, %v238
    %v240 = vpop.f32.mrb[0].mxu0
    %241 = vmatprep.mubr.bf16.mxu0 0
    %242 = vmatmul.mubr.bf16.gmra.mrb[0].mxu0 %v183
    %v243 = vpop.f32.mrb[0].mxu0
    %v244 = vadd.f32 %v158, %v243
    %v245 = vpop.f32.mrb[0].mxu0
    %v246 = vpop.f32.mrb[0].mxu0
    %v247 = vadd.f32 %v158, %v246
    %v248 = vpop.f32.mrb[0].mxu0
    %249 = vdwg.mxu0
    %v250 = vmax.f32 %v220, 0.0
    %v251 = vmax.f32 %v223, 0.0
    %v252 = vmax.f32 %v228, 0.0
    %v253 = vmax.f32 %v231, 0.0
    %v254 = vmax.f32 %v236, 0.0
    %v255 = vmax.f32 %v239, 0.0
    %v256 = vmax.f32 %v244, 0.0
    %v257 = vmax.f32 %v247, 0.0
    %v258 = vrot.slane %v250, 4
    %v259 = vadd.f32 %v250, %v258
    %v260 = vrot.slane %v259, 2
    %v261 = vadd.f32 %v259, %v260
    %v262 = vrot.slane %v261, 1
    %v263 = vadd.f32 %v261, %v262
    %v264 = vrot.slane %v251, 4
    %v265 = vadd.f32 %v251, %v264
    %v266 = vrot.slane %v265, 2
    %v267 = vadd.f32 %v265, %v266
    %v268 = vrot.slane %v267, 1
    %v269 = vadd.f32 %v267, %v268
    %v270 = vrot.slane %v252, 4
    %v271 = vadd.f32 %v252, %v270
    %v272 = vrot.slane %v271, 2
    %v273 = vadd.f32 %v271, %v272
    %v274 = vrot.slane %v273, 1
    %v275 = vadd.f32 %v273, %v274
    %v276 = vrot.slane %v253, 4
    %v277 = vadd.f32 %v253, %v276
    %v278 = vrot.slane %v277, 2
    %v279 = vadd.f32 %v277, %v278
    %v280 = vrot.slane %v279, 1
    %v281 = vadd.f32 %v279, %v280
    %v282 = vrot.slane %v254, 4
    %v283 = vadd.f32 %v254, %v282
    %v284 = vrot.slane %v283, 2
    %v285 = vadd.f32 %v283, %v284
    %v286 = vrot.slane %v285, 1
    %v287 = vadd.f32 %v285, %v286
    %v288 = vrot.slane %v255, 4
    %v289 = vadd.f32 %v255, %v288
    %v290 = vrot.slane %v289, 2
    %v291 = vadd.f32 %v289, %v290
    %v292 = vrot.slane %v291, 1
    %v293 = vadd.f32 %v291, %v292
    %v294 = vrot.slane %v256, 4
    %v295 = vadd.f32 %v256, %v294
    %v296 = vrot.slane %v295, 2
    %v297 = vadd.f32 %v295, %v296
    %v298 = vrot.slane %v297, 1
    %v299 = vadd.f32 %v297, %v298
    %v300 = vrot.slane %v257, 4
    %v301 = vadd.f32 %v257, %v300
    %v302 = vrot.slane %v301, 2
    %v303 = vadd.f32 %v301, %v302
    %v304 = vrot.slane %v303, 1
    %v305 = vadd.f32 %v303, %v304
    %v306 = vrcp.pop 8.0
    %v307 = vmul.f32 %v263, %v306
    %v308 = vmul.f32 %v269, %v306
    %v309 = vmul.f32 %v275, %v306
    %v310 = vmul.f32 %v281, %v306
    %v311 = vmul.f32 %v287, %v306
    %v312 = vmul.f32 %v293, %v306
    %v313 = vmul.f32 %v299, %v306
    %v314 = vmul.f32 %v305, %v306
    %v315 = vpack.c.bf16 %v307, %v307
    %v316 = vpack.c.bf16 %v308, %v308
    %v317 = vpack.c.bf16 %v309, %v309
    %v318 = vpack.c.bf16 %v310, %v310
    %v319 = vpack.c.bf16 %v311, %v311
    %v320 = vpack.c.bf16 %v312, %v312
    %v321 = vpack.c.bf16 %v313, %v313
    %v322 = vpack.c.bf16 %v314, %v314
    %v323 = vld [vmem:[#allocation7] sm:$0xf]
    %v324 = vld [vmem:[#allocation7 + $0x4] sm:$0xf]
    %v325 = vld [vmem:[#allocation7 + $0x8] sm:$0xf]
    %v326 = vld [vmem:[#allocation7 + $0xc] sm:$0xf]
    %v327 = vld [vmem:[#allocation7 + $0x10] sm:$0xf]
    %v328 = vld [vmem:[#allocation7 + $0x14] sm:$0xf]
    %v329 = vld [vmem:[#allocation7 + $0x18] sm:$0xf]
    %v330 = vld [vmem:[#allocation7 + $0x1c] sm:$0xf]
    %v331 = vld [vmem:[#allocation7 + $0x20] sm:$0xf]
    %v332 = vld [vmem:[#allocation7 + $0x24] sm:$0xf]
    %v333 = vld [vmem:[#allocation7 + $0x28] sm:$0xf]
    %v334 = vld [vmem:[#allocation7 + $0x2c] sm:$0xf]
    %v335 = vld [vmem:[#allocation7 + $0x30] sm:$0xf]
    %v336 = vld [vmem:[#allocation7 + $0x34] sm:$0xf]
    %v337 = vld [vmem:[#allocation7 + $0x38] sm:$0xf]
    %v338 = vld [vmem:[#allocation7 + $0x3c] sm:$0xf]
    %v339 = vld [vmem:[%s5] sm:$0x1]
    %v341 = vlaneseq
    %v342 = vshrl.u32 %v341, 7
    %v343 = vsub.s32 0, %v342
    %v344 = vrot.slane %v339, %v343
    %v354 = vunpack.c.l.b16 %v315
    %v355 = vunpack.c.l.b16 %v316
    %v356 = vunpack.c.l.b16 %v317
    %v357 = vunpack.c.l.b16 %v318
    %v358 = vunpack.c.l.b16 %v319
    %v359 = vunpack.c.l.b16 %v320
    %v360 = vunpack.c.l.b16 %v321
    %v361 = vunpack.c.l.b16 %v322
    %vm362 = vcmask 1041409
    %v363 = vsel %vm362, %v355, %v354
    %vm364 = vcmask 1042434
    %v365 = vsel %vm364, %v356, %v363
    %vm366 = vcmask 1043459
    %v367 = vsel %vm366, %v357, %v365
    %vm368 = vcmask 1044484
    %v369 = vsel %vm368, %v358, %v367
    %vm370 = vcmask 1045509
    %v371 = vsel %vm370, %v359, %v369
    %vm372 = vcmask 1046534
    %v373 = vsel %vm372, %v360, %v371
    %vm374 = vcmask 1047559
    %v375 = vsel %vm374, %v361, %v373
    %v376 = vpack.c.b16 %v375, %v375
    %v394 = vunpack.c.l.b16 %v323
    %v395 = vunpack.c.l.b16 %v324
    %v396 = vunpack.c.l.b16 %v325
    %v397 = vunpack.c.l.b16 %v326
    %v398 = vunpack.c.l.b16 %v327
    %v399 = vunpack.c.l.b16 %v328
    %v400 = vunpack.c.l.b16 %v329
    %v401 = vunpack.c.l.b16 %v330
    %v402 = vunpack.c.l.b16 %v331
    %v403 = vunpack.c.l.b16 %v332
    %v404 = vunpack.c.l.b16 %v333
    %v405 = vunpack.c.l.b16 %v334
    %v406 = vunpack.c.l.b16 %v335
    %v407 = vunpack.c.l.b16 %v336
    %v408 = vunpack.c.l.b16 %v337
    %v409 = vunpack.c.l.b16 %v338
    %v410 = vpack.c.b16 %v395, %v394
    %v411 = vpack.c.b16 %v397, %v396
    %v412 = vpack.c.b16 %v399, %v398
    %v413 = vpack.c.b16 %v401, %v400
    %v414 = vpack.c.b16 %v403, %v402
    %v415 = vpack.c.b16 %v405, %v404
    %v416 = vpack.c.b16 %v407, %v406
    %v417 = vpack.c.b16 %v409, %v408
    %426 = vmatprep.subr.bf16.mxu0 0
    %427 = vmatpush1.bf16.msra.mxu0 %v410
    %428 = vmatprep.subr.bf16.mxu0 0
    %429 = vmatpush1.bf16.msra.mxu0 %v411
    %430 = vmatprep.subr.bf16.mxu0 0
    %431 = vmatpush1.bf16.msra.mxu0 %v412
    %432 = vmatprep.subr.bf16.mxu0 0
    %433 = vmatpush1.bf16.msra.mxu0 %v413
    %434 = vmatprep.subr.bf16.mxu0 0
    %435 = vmatpush1.bf16.msra.mxu0 %v414
    %436 = vmatprep.subr.bf16.mxu0 0
    %437 = vmatpush1.bf16.msra.mxu0 %v415
    %438 = vmatprep.subr.bf16.mxu0 0
    %439 = vmatpush1.bf16.msra.mxu0 %v416
    %440 = vmatprep.subr.bf16.mxu0 0
    %441 = vmatpush1.bf16.msra.mxu0 %v417
    %442 = vmatprep.subr.bf16.mxu0 0
    %443 = vmatpush1.bf16.msra.mxu0 0
    %444 = vmatprep.subr.bf16.mxu0 0
    %445 = vmatpush1.bf16.msra.mxu0 0
    %446 = vmatprep.subr.bf16.mxu0 0
    %447 = vmatpush1.bf16.msra.mxu0 0
    %448 = vmatprep.subr.bf16.mxu0 0
    %449 = vmatpush1.bf16.msra.mxu0 0
    %450 = vmatprep.subr.bf16.mxu0 0
    %451 = vmatpush1.bf16.msra.mxu0 0
    %452 = vmatprep.subr.bf16.mxu0 0
    %453 = vmatpush1.bf16.msra.mxu0 0
    %454 = vmatprep.subr.bf16.mxu0 0
    %455 = vmatpush1.bf16.msra.mxu0 0
    %456 = vmatprep.subr.bf16.mxu0 0
    %457 = vmatpush1.bf16.msra.mxu0 0
    %458 = vmatprep.mubr.bf16.mxu0 0
    %459 = vmatmul.mubr.bf16.gmra.mrb[0].mxu0 %v376
    %v460 = vpop.f32.mrb[0].mxu0
    %v461 = vadd.f32 %v344, %v460
    %v462 = vpop.f32.mrb[0].mxu0
    %v463 = vpop.f32.mrb[0].mxu0
    %v464 = vpop.f32.mrb[0].mxu0
    %465 = vdwg.mxu0
    %v467 = vcombine.high %v461, %v461
    %v469 = vunpack.c.l.s4 1966171168
    %v470 = vunpack.c.0.s8 %v469
    %v471 = vlaneseq
    %v472 = vshrl.u32 %v471, 7
    %v473 = vsub.s32 %v470, %v472
    %v474 = vrot.slane %v461, %v473
    %v476 = vunpack.c.l.s4 1966171168
    %v477 = vunpack.c.0.s8 %v476
    %v478 = vlaneseq
    %v479 = vshrl.u32 %v478, 7
    %v480 = vsub.s32 %v477, %v479
    %v481 = vrot.slane %v467, %v480
    %v482 = vcombine.high %v474, %v474
    %v483 = vcombine.high %v481, %v481
    %v485 = vunpack.c.l.s4 1966171168
    %v486 = vunpack.c.0.s8 %v485
    %v487 = vlaneseq
    %v488 = vshrl.u32 %v487, 7
    %v489 = vsub.s32 %v486, %v488
    %v490 = vrot.slane %v474, %v489
    %v492 = vunpack.c.l.s4 1966171168
    %v493 = vunpack.c.0.s8 %v492
    %v494 = vlaneseq
    %v495 = vshrl.u32 %v494, 7
    %v496 = vsub.s32 %v493, %v495
    %v497 = vrot.slane %v481, %v496
    %v499 = vunpack.c.l.s4 1966171168
    %v500 = vunpack.c.0.s8 %v499
    %v501 = vlaneseq
    %v502 = vshrl.u32 %v501, 7
    %v503 = vsub.s32 %v500, %v502
    %v504 = vrot.slane %v482, %v503
    %v506 = vunpack.c.l.s4 1966171168
    %v507 = vunpack.c.0.s8 %v506
    %v508 = vlaneseq
    %v509 = vshrl.u32 %v508, 7
    %v510 = vsub.s32 %v507, %v509
    %v511 = vrot.slane %v483, %v510
    %v512 = vcombine.high %v490, %v490
    %v513 = vcombine.high %v497, %v497
    %v514 = vcombine.high %v504, %v504
    %v515 = vcombine.high %v511, %v511
    %v516 = vlaneseq
    %v517 = vshrl.u32 %v516, 7
    %v518 = vsub.s32 0, %v517
    %v519 = vrot.slane %v490, %v518
    %v520 = vlaneseq
    %v521 = vshrl.u32 %v520, 7
    %v522 = vsub.s32 0, %v521
    %v523 = vrot.slane %v504, %v522
    %v524 = vlaneseq
    %v525 = vshrl.u32 %v524, 7
    %v526 = vsub.s32 0, %v525
    %v527 = vrot.slane %v512, %v526
    %v528 = vlaneseq
    %v529 = vshrl.u32 %v528, 7
    %v530 = vsub.s32 0, %v529
    %v531 = vrot.slane %v514, %v530
    %v532 = vlaneseq
    %v533 = vshrl.u32 %v532, 7
    %v534 = vsub.s32 0, %v533
    %v535 = vrot.slane %v497, %v534
    %v536 = vlaneseq
    %v537 = vshrl.u32 %v536, 7
    %v538 = vsub.s32 0, %v537
    %v539 = vrot.slane %v511, %v538
    %v540 = vlaneseq
    %v541 = vshrl.u32 %v540, 7
    %v542 = vsub.s32 0, %v541
    %v543 = vrot.slane %v513, %v542
    %v544 = vlaneseq
    %v545 = vshrl.u32 %v544, 7
    %v546 = vsub.s32 0, %v545
    %v547 = vrot.slane %v515, %v546
    %v556 = vadd.f32 %v250, %v519
    %v557 = vadd.f32 %v251, %v523
    %v558 = vadd.f32 %v252, %v527
    %v559 = vadd.f32 %v253, %v531
    %v560 = vadd.f32 %v254, %v535
    %v561 = vadd.f32 %v255, %v539
    %v562 = vadd.f32 %v256, %v543
    %v563 = vadd.f32 %v257, %v547
    %v564 = vmax.f32 %v556, 0.0
    %v565 = vmax.f32 %v557, 0.0
    %v566 = vmax.f32 %v558, 0.0
    %v567 = vmax.f32 %v559, 0.0
    %v568 = vmax.f32 %v560, 0.0
    %v569 = vmax.f32 %v561, 0.0
    %v570 = vmax.f32 %v562, 0.0
    %v571 = vmax.f32 %v563, 0.0
    %v572 = vrot.slane %v564, 4
    %v573 = vadd.f32 %v564, %v572
    %v574 = vrot.slane %v573, 2
    %v575 = vadd.f32 %v573, %v574
    %v576 = vrot.slane %v575, 1
    %v577 = vadd.f32 %v575, %v576
    %v578 = vrot.slane %v565, 4
    %v579 = vadd.f32 %v565, %v578
    %v580 = vrot.slane %v579, 2
    %v581 = vadd.f32 %v579, %v580
    %v582 = vrot.slane %v581, 1
    %v583 = vadd.f32 %v581, %v582
    %v584 = vrot.slane %v566, 4
    %v585 = vadd.f32 %v566, %v584
    %v586 = vrot.slane %v585, 2
    %v587 = vadd.f32 %v585, %v586
    %v588 = vrot.slane %v587, 1
    %v589 = vadd.f32 %v587, %v588
    %v590 = vrot.slane %v567, 4
    %v591 = vadd.f32 %v567, %v590
    %v592 = vrot.slane %v591, 2
    %v593 = vadd.f32 %v591, %v592
    %v594 = vrot.slane %v593, 1
    %v595 = vadd.f32 %v593, %v594
    %v596 = vrot.slane %v568, 4
    %v597 = vadd.f32 %v568, %v596
    %v598 = vrot.slane %v597, 2
    %v599 = vadd.f32 %v597, %v598
    %v600 = vrot.slane %v599, 1
    %v601 = vadd.f32 %v599, %v600
    %v602 = vrot.slane %v569, 4
    %v603 = vadd.f32 %v569, %v602
    %v604 = vrot.slane %v603, 2
    %v605 = vadd.f32 %v603, %v604
    %v606 = vrot.slane %v605, 1
    %v607 = vadd.f32 %v605, %v606
    %v608 = vrot.slane %v570, 4
    %v609 = vadd.f32 %v570, %v608
    %v610 = vrot.slane %v609, 2
    %v611 = vadd.f32 %v609, %v610
    %v612 = vrot.slane %v611, 1
    %v613 = vadd.f32 %v611, %v612
    %v614 = vrot.slane %v571, 4
    %v615 = vadd.f32 %v571, %v614
    %v616 = vrot.slane %v615, 2
    %v617 = vadd.f32 %v615, %v616
    %v618 = vrot.slane %v617, 1
    %v619 = vadd.f32 %v617, %v618
    %v620 = vmul.f32 %v577, %v306
    %v621 = vmul.f32 %v583, %v306
    %v622 = vmul.f32 %v589, %v306
    %v623 = vmul.f32 %v595, %v306
    %v624 = vmul.f32 %v601, %v306
    %v625 = vmul.f32 %v607, %v306
    %v626 = vmul.f32 %v613, %v306
    %v627 = vmul.f32 %v619, %v306
    %v628 = vpack.c.bf16 %v620, %v620
    %v629 = vpack.c.bf16 %v621, %v621
    %v630 = vpack.c.bf16 %v622, %v622
    %v631 = vpack.c.bf16 %v623, %v623
    %v632 = vpack.c.bf16 %v624, %v624
    %v633 = vpack.c.bf16 %v625, %v625
    %v634 = vpack.c.bf16 %v626, %v626
    %v635 = vpack.c.bf16 %v627, %v627
    %v636 = vld [vmem:[%s6] sm:$0xf]
    %v637 = vld [vmem:[%s6 + $0x4] sm:$0xf]
    %v638 = vld [vmem:[%s6 + $0x8] sm:$0xf]
    %v639 = vld [vmem:[%s6 + $0xc] sm:$0xf]
    %v640 = vld [vmem:[%s6 + $0x10] sm:$0xf]
    %v641 = vld [vmem:[%s6 + $0x14] sm:$0xf]
    %v642 = vld [vmem:[%s6 + $0x18] sm:$0xf]
    %v643 = vld [vmem:[%s6 + $0x1c] sm:$0xf]
    %v644 = vld [vmem:[%s6 + $0x20] sm:$0xf]
    %v645 = vld [vmem:[%s6 + $0x24] sm:$0xf]
    %v646 = vld [vmem:[%s6 + $0x28] sm:$0xf]
    %v647 = vld [vmem:[%s6 + $0x2c] sm:$0xf]
    %v648 = vld [vmem:[%s6 + $0x30] sm:$0xf]
    %v649 = vld [vmem:[%s6 + $0x34] sm:$0xf]
    %v650 = vld [vmem:[%s6 + $0x38] sm:$0xf]
    %v651 = vld [vmem:[%s6 + $0x3c] sm:$0xf]
    %v652 = vld [vmem:[#allocation8] sm:$0x1]
    %v654 = vlaneseq
    %v655 = vshrl.u32 %v654, 7
    %v656 = vsub.s32 0, %v655
    %v657 = vrot.slane %v652, %v656
    %v667 = vunpack.c.l.b16 %v628
    %v668 = vunpack.c.l.b16 %v629
    %v669 = vunpack.c.l.b16 %v630
    %v670 = vunpack.c.l.b16 %v631
    %v671 = vunpack.c.l.b16 %v632
    %v672 = vunpack.c.l.b16 %v633
    %v673 = vunpack.c.l.b16 %v634
    %v674 = vunpack.c.l.b16 %v635
    %v675 = vsel %vm362, %v668, %v667
    %v676 = vsel %vm364, %v669, %v675
    %v677 = vsel %vm366, %v670, %v676
    %v678 = vsel %vm368, %v671, %v677
    %v679 = vsel %vm370, %v672, %v678
    %v680 = vsel %vm372, %v673, %v679
    %v681 = vsel %vm374, %v674, %v680
    %v682 = vpack.c.b16 %v681, %v681
    %v700 = vunpack.c.l.b16 %v636
    %v701 = vunpack.c.l.b16 %v637
    %v702 = vunpack.c.l.b16 %v638
    %v703 = vunpack.c.l.b16 %v639
    %v704 = vunpack.c.l.b16 %v640
    %v705 = vunpack.c.l.b16 %v641
    %v706 = vunpack.c.l.b16 %v642
    %v707 = vunpack.c.l.b16 %v643
    %v708 = vunpack.c.l.b16 %v644
    %v709 = vunpack.c.l.b16 %v645
    %v710 = vunpack.c.l.b16 %v646
    %v711 = vunpack.c.l.b16 %v647
    %v712 = vunpack.c.l.b16 %v648
    %v713 = vunpack.c.l.b16 %v649
    %v714 = vunpack.c.l.b16 %v650
    %v715 = vunpack.c.l.b16 %v651
    %v716 = vpack.c.b16 %v701, %v700
    %v717 = vpack.c.b16 %v703, %v702
    %v718 = vpack.c.b16 %v705, %v704
    %v719 = vpack.c.b16 %v707, %v706
    %v720 = vpack.c.b16 %v709, %v708
    %v721 = vpack.c.b16 %v711, %v710
    %v722 = vpack.c.b16 %v713, %v712
    %v723 = vpack.c.b16 %v715, %v714
    %732 = vmatprep.subr.bf16.mxu0 0
    %733 = vmatpush1.bf16.msra.mxu0 %v716
    %734 = vmatprep.subr.bf16.mxu0 0
    %735 = vmatpush1.bf16.msra.mxu0 %v717
    %736 = vmatprep.subr.bf16.mxu0 0
    %737 = vmatpush1.bf16.msra.mxu0 %v718
    %738 = vmatprep.subr.bf16.mxu0 0
    %739 = vmatpush1.bf16.msra.mxu0 %v719
    %740 = vmatprep.subr.bf16.mxu0 0
    %741 = vmatpush1.bf16.msra.mxu0 %v720
    %742 = vmatprep.subr.bf16.mxu0 0
    %743 = vmatpush1.bf16.msra.mxu0 %v721
    %744 = vmatprep.subr.bf16.mxu0 0
    %745 = vmatpush1.bf16.msra.mxu0 %v722
    %746 = vmatprep.subr.bf16.mxu0 0
    %747 = vmatpush1.bf16.msra.mxu0 %v723
    %748 = vmatprep.subr.bf16.mxu0 0
    %749 = vmatpush1.bf16.msra.mxu0 0
    %750 = vmatprep.subr.bf16.mxu0 0
    %751 = vmatpush1.bf16.msra.mxu0 0
    %752 = vmatprep.subr.bf16.mxu0 0
    %753 = vmatpush1.bf16.msra.mxu0 0
    %754 = vmatprep.subr.bf16.mxu0 0
    %755 = vmatpush1.bf16.msra.mxu0 0
    %756 = vmatprep.subr.bf16.mxu0 0
    %757 = vmatpush1.bf16.msra.mxu0 0
    %758 = vmatprep.subr.bf16.mxu0 0
    %759 = vmatpush1.bf16.msra.mxu0 0
    %760 = vmatprep.subr.bf16.mxu0 0
    %761 = vmatpush1.bf16.msra.mxu0 0
    %762 = vmatprep.subr.bf16.mxu0 0
    %763 = vmatpush1.bf16.msra.mxu0 0
    %764 = vmatprep.mubr.bf16.mxu0 0
    %765 = vmatmul.mubr.bf16.gmra.mrb[0].mxu0 %v682
    %v766 = vpop.f32.mrb[0].mxu0
    %v767 = vadd.f32 %v657, %v766
    %v768 = vpop.f32.mrb[0].mxu0
    %v769 = vpop.f32.mrb[0].mxu0
    %v770 = vpop.f32.mrb[0].mxu0
    %771 = vdwg.mxu0
    %v772 = vpack.c.bf16 %v767, %v767
    %v773 = vld [vmem:[#allocation10] sm:$0xf]
    %v774 = vld [vmem:[#allocation10 + $0x4] sm:$0xf]
    %v775 = vld [vmem:[#allocation10 + $0x8] sm:$0xf]
    %v776 = vld [vmem:[#allocation10 + $0xc] sm:$0xf]
    %v777 = vld [vmem:[#allocation10 + $0x10] sm:$0xf]
    %v778 = vld [vmem:[#allocation10 + $0x14] sm:$0xf]
    %v779 = vld [vmem:[#allocation10 + $0x18] sm:$0xf]
    %v780 = vld [vmem:[#allocation10 + $0x1c] sm:$0xf]
    %v781 = vld [vmem:[#allocation11] sm:$0x1]
    %v783 = vlaneseq
    %v784 = vshrl.u32 %v783, 7
    %v785 = vsub.s32 0, %v784
    %v786 = vrot.slane %v781, %v785
    %v796 = vunpack.c.l.b16 %v773
    %v797 = vunpack.c.l.b16 %v774
    %v798 = vunpack.c.l.b16 %v775
    %v799 = vunpack.c.l.b16 %v776
    %v800 = vunpack.c.l.b16 %v777
    %v801 = vunpack.c.l.b16 %v778
    %v802 = vunpack.c.l.b16 %v779
    %v803 = vunpack.c.l.b16 %v780
    %v804 = vpack.c.b16 %v797, %v796
    %v805 = vpack.c.b16 %v799, %v798
    %v806 = vpack.c.b16 %v801, %v800
    %v807 = vpack.c.b16 %v803, %v802
    %vm812 = vcmask 523264
    %v814 = vsel %vm812, %v772, 0
    %816 = vmatprep.subr.bf16.mxu0 0
    %817 = vmatpush1.bf16.msra.mxu0 %v804
    %818 = vmatprep.subr.bf16.mxu0 0
    %819 = vmatpush1.bf16.msra.mxu0 %v805
    %820 = vmatprep.subr.bf16.mxu0 0
    %821 = vmatpush1.bf16.msra.mxu0 %v806
    %822 = vmatprep.subr.bf16.mxu0 0
    %823 = vmatpush1.bf16.msra.mxu0 %v807
    %824 = vmatprep.subr.bf16.mxu0 0
    %825 = vmatpush1.bf16.msra.mxu0 0
    %826 = vmatprep.subr.bf16.mxu0 0
    %827 = vmatpush1.bf16.msra.mxu0 0
    %828 = vmatprep.subr.bf16.mxu0 0
    %829 = vmatpush1.bf16.msra.mxu0 0
    %830 = vmatprep.subr.bf16.mxu0 0
    %831 = vmatpush1.bf16.msra.mxu0 0
    %832 = vmatprep.subr.bf16.mxu0 0
    %833 = vmatpush1.bf16.msra.mxu0 0
    %834 = vmatprep.subr.bf16.mxu0 0
    %835 = vmatpush1.bf16.msra.mxu0 0
    %836 = vmatprep.subr.bf16.mxu0 0
    %837 = vmatpush1.bf16.msra.mxu0 0
    %838 = vmatprep.subr.bf16.mxu0 0
    %839 = vmatpush1.bf16.msra.mxu0 0
    %840 = vmatprep.subr.bf16.mxu0 0
    %841 = vmatpush1.bf16.msra.mxu0 0
    %842 = vmatprep.subr.bf16.mxu0 0
    %843 = vmatpush1.bf16.msra.mxu0 0
    %844 = vmatprep.subr.bf16.mxu0 0
    %845 = vmatpush1.bf16.msra.mxu0 0
    %846 = vmatprep.subr.bf16.mxu0 0
    %847 = vmatpush1.bf16.msra.mxu0 0
    %848 = vmatprep.mubr.bf16.mxu0 0
    %849 = vmatmul.mubr.bf16.gmra.mrb[0].mxu0 %v814
    %v850 = vpop.f32.mrb[0].mxu0
    %v851 = vadd.f32 %v786, %v850
    %v852 = vpop.f32.mrb[0].mxu0
    %v853 = vpop.f32.mrb[0].mxu0
    %v854 = vpop.f32.mrb[0].mxu0
    %855 = vdwg.mxu0
    %v856 = vmax.f32 %v851, 0.0
    %v857 = vpack.c.bf16 %v856, %v856
    %v858 = vld [vmem:[%s10] sm:$0xf]
    %v859 = vld [vmem:[%s10 + $0x4] sm:$0xf]
    %v860 = vld [vmem:[%s10 + $0x8] sm:$0xf]
    %v861 = vld [vmem:[%s10 + $0xc] sm:$0xf]
    %v862 = vld [vmem:[%s10 + $0x10] sm:$0xf]
    %v863 = vld [vmem:[%s10 + $0x14] sm:$0xf]
    %v864 = vld [vmem:[%s10 + $0x18] sm:$0xf]
    %v865 = vld [vmem:[%s10 + $0x1c] sm:$0xf]
    %v866 = vld [vmem:[%s10 + $0x20] sm:$0xf]
    %v867 = vld [vmem:[%s10 + $0x24] sm:$0xf]
    %v868 = vld [vmem:[%s10 + $0x28] sm:$0xf]
    %v869 = vld [vmem:[%s10 + $0x2c] sm:$0xf]
    %v870 = vld [vmem:[%s10 + $0x30] sm:$0xf]
    %v871 = vld [vmem:[%s10 + $0x34] sm:$0xf]
    %v872 = vld [vmem:[%s10 + $0x38] sm:$0xf]
    %v873 = vld [vmem:[%s10 + $0x3c] sm:$0xf]
    %v874 = vld [vmem:[%s11] sm:$0x1]
    %v876 = vlaneseq
    %v877 = vshrl.u32 %v876, 7
    %v878 = vsub.s32 0, %v877
    %v879 = vrot.slane %v874, %v878
    %v897 = vunpack.c.l.b16 %v858
    %v898 = vunpack.c.l.b16 %v859
    %v899 = vunpack.c.l.b16 %v860
    %v900 = vunpack.c.l.b16 %v861
    %v901 = vunpack.c.l.b16 %v862
    %v902 = vunpack.c.l.b16 %v863
    %v903 = vunpack.c.l.b16 %v864
    %v904 = vunpack.c.l.b16 %v865
    %v905 = vunpack.c.l.b16 %v866
    %v906 = vunpack.c.l.b16 %v867
    %v907 = vunpack.c.l.b16 %v868
    %v908 = vunpack.c.l.b16 %v869
    %v909 = vunpack.c.l.b16 %v870
    %v910 = vunpack.c.l.b16 %v871
    %v911 = vunpack.c.l.b16 %v872
    %v912 = vunpack.c.l.b16 %v873
    %v913 = vpack.c.b16 %v898, %v897
    %v914 = vpack.c.b16 %v900, %v899
    %v915 = vpack.c.b16 %v902, %v901
    %v916 = vpack.c.b16 %v904, %v903
    %v917 = vpack.c.b16 %v906, %v905
    %v918 = vpack.c.b16 %v908, %v907
    %v919 = vpack.c.b16 %v910, %v909
    %v920 = vpack.c.b16 %v912, %v911
    %929 = vmatprep.subr.bf16.mxu0 0
    %930 = vmatpush1.bf16.msra.mxu0 %v913
    %931 = vmatprep.subr.bf16.mxu0 0
    %932 = vmatpush1.bf16.msra.mxu0 %v914
    %933 = vmatprep.subr.bf16.mxu0 0
    %934 = vmatpush1.bf16.msra.mxu0 %v915
    %935 = vmatprep.subr.bf16.mxu0 0
    %936 = vmatpush1.bf16.msra.mxu0 %v916
    %937 = vmatprep.subr.bf16.mxu0 0
    %938 = vmatpush1.bf16.msra.mxu0 %v917
    %939 = vmatprep.subr.bf16.mxu0 0
    %940 = vmatpush1.bf16.msra.mxu0 %v918
    %941 = vmatprep.subr.bf16.mxu0 0
    %942 = vmatpush1.bf16.msra.mxu0 %v919
    %943 = vmatprep.subr.bf16.mxu0 0
    %944 = vmatpush1.bf16.msra.mxu0 %v920
    %945 = vmatprep.subr.bf16.mxu0 0
    %946 = vmatpush1.bf16.msra.mxu0 0
    %947 = vmatprep.subr.bf16.mxu0 0
    %948 = vmatpush1.bf16.msra.mxu0 0
    %949 = vmatprep.subr.bf16.mxu0 0
    %950 = vmatpush1.bf16.msra.mxu0 0
    %951 = vmatprep.subr.bf16.mxu0 0
    %952 = vmatpush1.bf16.msra.mxu0 0
    %953 = vmatprep.subr.bf16.mxu0 0
    %954 = vmatpush1.bf16.msra.mxu0 0
    %955 = vmatprep.subr.bf16.mxu0 0
    %956 = vmatpush1.bf16.msra.mxu0 0
    %957 = vmatprep.subr.bf16.mxu0 0
    %958 = vmatpush1.bf16.msra.mxu0 0
    %959 = vmatprep.subr.bf16.mxu0 0
    %960 = vmatpush1.bf16.msra.mxu0 0
    %961 = vmatprep.mubr.bf16.mxu0 0
    %962 = vmatmul.mubr.bf16.gmra.mrb[0].mxu0 %v857
    %v963 = vpop.f32.mrb[0].mxu0
    %v964 = vadd.f32 %v879, %v963
    %v965 = vpop.f32.mrb[0].mxu0
    %v966 = vpop.f32.mrb[0].mxu0
    %v967 = vpop.f32.mrb[0].mxu0
    %968 = vdwg.mxu0
    %969 = vst [vmem:[#allocation13] sm:$0xff] %v964
    // Predicated region
    $region74: #{tpu_custom_call.1} parent=1 // pred_check
      _
    $region75: #{tpu_custom_call.1} parent=1 // pred_check_branch
      %971 = sbr.rel (0) target = $region77
    $region76: #{tpu_custom_call.1} parent=1 // pred_region
      %s973 = ssub.s32 128, 128
      %974 = vsyncadd [#allocation4], %s973
      %s976 = sshll.u32 [#allocation13], 4
      %s977 = int_to_ptr.vmem [resolvable:$true] %s976
      %979 = dma.vmem_to_hbm [thread:$0]  %s977, 128, %s12, [#allocation4]
    $region77: #{tpu_custom_call.1} parent=1 // pred_fallthru
      _
    // Predicated region
    $region78: #{tpu_custom_call.1} parent=1 // pred_check
      _
    $region79: #{tpu_custom_call.1} parent=1 // pred_check_branch
      %981 = sbr.rel (0) target = $region81
    $region80: #{tpu_custom_call.1} parent=1 // pred_region
      %982 = dma.done [#allocation4], 128
    $region81: #{tpu_custom_call.1} parent=1 // pred_fallthru
      _
    %983 = vsyncpa [#allocation3], 1
    %984 = vsyncpa [#allocation6], 1
    %985 = vsyncpa [#allocation9], 1
    %986 = vsyncpa [#allocation12], 1
    %987 = vsyncpa [#allocation4], 1

</llo_original>
